<compile_context>
chip_gen: v7x
topology: tpu7x:2x2x1
jax: 0.10.0
libtpu: 0.0.40
codegen_flags: <defaults>
</compile_context>

<pallas_src>
import jax
import jax.numpy as jnp
from jax.experimental import pallas as pl
from jax.experimental.pallas import tpu as pltpu


def _round_up(x, m):
    return (x + m - 1) // m * m


# -----------------------------------------------------------------------------
# Pallas kernel: one column-tile of the strided-conv GEMM, batch folded into
# the block.
#   x_ref: (B, CinK, tl) bf16     w_ref: (Cout, CinK) bf16
#   b_ref: (B*Cout, 1)   f32      o_ref: (B*Cout, tl) f32
# -----------------------------------------------------------------------------
def _down_conv_kernel(x_ref, w_ref, b_ref, o_ref):
    B = x_ref.shape[0]
    # Static unroll over B (B is tiny); each dot stays a clean 2-D MXU matmul.
    accs = [
        jnp.dot(w_ref[...], x_ref[b], preferred_element_type=jnp.float32)
        for b in range(B)
    ]
    # Single lane-dense store of the full (B*Cout, tl) block; f32 bias epilogue
    # on the VPU (v5e-safe).
    o_ref[...] = jnp.concatenate(accs, axis=0) + b_ref[...]
    # NOTE: at production channel widths (Cin, Cout >= 64) add a K reduction
    # grid axis ("arbitrary", f32 accumulator scratch) and size tiles toward
    # the 256x256 MXU on v6e/v7x; at this test shape the kernel is overhead /
    # memory bound and the tiny dot rides in an otherwise idle MXU slot.


def _choose_col_tile(L, B, CinK, BCout, vmem_limit):
    """Pick the lane-dim tile: 128-multiple (or the whole axis) sized from VMEM."""
    # Bytes per tl-column: double-buffered x tile (bf16) + double-buffered out
    # tile (f32); weights/bias are resident and tiny.
    per_col = 2 * (B * CinK * 2 + BCout * 4)
    budget = max(vmem_limit - (2 << 20), 1 << 20)       # headroom for w/b/scratch
    tl_max = max(128, (budget // per_col) // 128 * 128)

    if L <= tl_max:
        # Keep >= 2 grid steps when the axis splits into lane-aligned halves
        # (feeds both v7x TensorCores); otherwise take the whole axis — a block
        # dim equal to the full array dim is legal regardless of alignment.
        if L % 256 == 0 and (L // 2) <= tl_max:
            return L // 2
        return L
    # Large L: 128-multiple tile; Pallas masks the partial last block.
    return tl_max


def _down_conv_matmul(x_cols, w_mat, bias_tiled, *, vmem_limit=32 * 1024 * 1024):
    """x_cols: (B, CinK, L) bf16, w_mat: (Cout, CinK) bf16, bias_tiled: (B*Cout,1) f32."""
    B, CinK, L = x_cols.shape
    Cout = w_mat.shape[0]
    BCout = bias_tiled.shape[0]

    tl = _choose_col_tile(L, B, CinK, BCout, vmem_limit)
    grid_l = pl.cdiv(L, tl)

    out = pl.pallas_call(
        _down_conv_kernel,
        out_shape=jax.ShapeDtypeStruct((BCout, L), jnp.float32),
        grid_spec=pltpu.PrefetchScalarGridSpec(
            num_scalar_prefetch=0,
            grid=(grid_l,),
            in_specs=[
                pl.BlockSpec((B, CinK, tl), lambda l: (0, 0, l)),
                # constant index_maps: weights/bias fetched once, not re-DMA'd
                pl.BlockSpec((Cout, CinK), lambda l: (0, 0)),
                pl.BlockSpec((BCout, 1), lambda l: (0, 0)),
            ],
            out_specs=pl.BlockSpec((BCout, tl), lambda l: (0, l)),
        ),
        compiler_params=pltpu.CompilerParams(
            dimension_semantics=("parallel",),
            vmem_limit_bytes=vmem_limit,
        ),
    )(x_cols, w_mat, bias_tiled)

    return out  # (B*Cout, L) f32, rows ordered b*Cout + o


# -----------------------------------------------------------------------------
# down_net: Conv2d(Cin, Cout, kernel_size=2, stride=2), NCHW in/out
# -----------------------------------------------------------------------------
def down_net_apply(x_nchw, weight, bias):
    """weight: (Cout, Cin, 2, 2) (PyTorch Conv2d layout), bias: (Cout,)."""
    B, Cin, H, W = x_nchw.shape
    Cout, _, kH, kW = weight.shape
    assert H % kH == 0 and W % kW == 0, "k=2,s=2 downsample needs even H, W"
    H2, W2 = H // kH, W // kW
    L = H2 * W2

    # Cast to bf16 BEFORE the im2col layout pass -> the transpose moves half
    # the HBM bytes.  k=2,s=2 im2col over non-overlapping 2x2 patches:
    # (B, Cin*kH*kW, H2*W2), spatial axis on the lanes.
    # TODO(synk): fuse this patch extraction into the kernel (stride-2 lane
    # de-interleave via pl.ds(stride=2)/pltpu.roll on a memory_space=pl.ANY
    # input) to remove this extra HBM read+write pass entirely.
    xb = x_nchw.astype(jnp.bfloat16)
    xp = xb.reshape(B, Cin, H2, kH, W2, kW)
    xp = jnp.transpose(xp, (0, 1, 3, 5, 2, 4))          # (B, Cin, kH, kW, H2, W2)
    x_cols = xp.reshape(B, Cin * kH * kW, L)

    # bf16 MXU weights; contraction index order (ci, ki, kj) matches x_cols.
    w_mat = weight.reshape(Cout, Cin * kH * kW).astype(jnp.bfloat16)
    # Bias pre-tiled to the stacked (B*Cout, 1) row order used by the kernel.
    bias_tiled = jnp.tile(bias.astype(jnp.float32), B).reshape(B * Cout, 1)

    y = _down_conv_matmul(x_cols, w_mat, bias_tiled)    # (B*Cout, L) f32
    # Rows are b*Cout + o and columns are i*W2 + j -> free row-major reshape.
    return y.reshape(B, Cout, H2, W2)


# -----------------------------------------------------------------------------
# UnetWithEmbeddingsDownWrapper.forward
# -----------------------------------------------------------------------------
def unet_with_embeddings_down_wrapper(x, weight, bias):
    x1, x2 = x
    return (down_net_apply(x1, weight, bias), x2)


# -----------------------------------------------------------------------------
# pure-JAX reference for the strided conv (sanity check)
# -----------------------------------------------------------------------------
def _ref_conv_s2(x_nchw, weight, bias):
    B, Cin, H, W = x_nchw.shape
    Cout, _, kH, kW = weight.shape
    xp = x_nchw.reshape(B, Cin, H // kH, kH, W // kW, kW)
    y = jnp.einsum("bcipjq,ocpq->boij", xp, weight)
    return y + bias[None, :, None, None]


if __name__ == "__main__":
    key = jax.random.PRNGKey(0)
    k1, k2, k3, k4 = jax.random.split(key, 4)

    B, Cin, Cout, H, W = 2, 4, 4, 16, 16

    # x1: feature map fed to the down block; x2: passthrough embeddings tensor.
    x1 = jax.random.normal(k1, (B, Cin, H, W), dtype=jnp.float32)
    x2 = jax.random.normal(k2, (B, 8, 32), dtype=jnp.float32)

    # deterministic Conv2d(Cin, Cout, 2, stride=2) parameters
    weight = jax.random.normal(k3, (Cout, Cin, 2, 2), dtype=jnp.float32) * 0.1
    bias = jax.random.normal(k4, (Cout,), dtype=jnp.float32) * 0.1

    out1, out2 = unet_with_embeddings_down_wrapper((x1, x2), weight, bias)
    out1 = jax.block_until_ready(out1)
    out2 = jax.block_until_ready(out2)

    # reference built from the same bf16-cast operands the kernel consumes
    x1_c = x1.astype(jnp.bfloat16).astype(jnp.float32)
    w_c = weight.astype(jnp.bfloat16).astype(jnp.float32)
    ref1 = _ref_conv_s2(x1_c, w_c, bias)

    assert out1.shape == (B, Cout, H // 2, W // 2)
    assert out2.shape == x2.shape and jnp.allclose(out2, x2)
    assert jnp.allclose(out1, ref1, atol=1e-3, rtol=1e-3)

    print("KERNEL_OK")
</pallas_src>

<mosaic_0001>
module attributes {stable_mosaic.version = 11 : i64} {
  func.func @_down_conv_kernel(%arg0: i32, %arg1: memref<2x16x64xbf16, #tpu.memory_space<vmem>>, %arg2: memref<4x16xbf16, #tpu.memory_space<vmem>>, %arg3: memref<8x1xf32, #tpu.memory_space<vmem>>, %arg4: memref<8x64xf32, #tpu.memory_space<vmem>>) attributes {dimension_semantics = [#tpu.dimension_semantics<parallel>], iteration_bounds = array<i64: 1>, scalar_prefetch = 0 : i64, scratch_operands = 0 : i64, tpu.core_type = #tpu.core_type<tc>, window_params = [{transform_indices = @transform_0, window_bounds = array<i64: 2, 16, 64>}, {pipeline_mode = #tpu.pipeline_mode<synchronous>, transform_indices = @transform_1, window_bounds = array<i64: 4, 16>}, {pipeline_mode = #tpu.pipeline_mode<synchronous>, transform_indices = @transform_2, window_bounds = array<i64: 8, 1>}, {transform_indices = @transform_3, window_bounds = array<i64: 8, 64>}]} {
    %c0 = arith.constant 0 : index
    %c0_0 = arith.constant 0 : index
    %0 = vector.load %arg2[%c0, %c0_0] : memref<4x16xbf16, #tpu.memory_space<vmem>>, vector<4x16xbf16>
    %c0_1 = arith.constant 0 : index
    %c0_2 = arith.constant 0 : index
    %c0_3 = arith.constant 0 : index
    %1 = vector.load %arg1[%c0_1, %c0_2, %c0_3] : memref<2x16x64xbf16, #tpu.memory_space<vmem>>, vector<1x16x64xbf16>
    %2 = vector.shape_cast %1 : vector<1x16x64xbf16> to vector<16x64xbf16>
    %cst = arith.constant dense<0.000000e+00> : vector<4x64xf32>
    %3 = tpu.matmul %0, %2, %cst {dimension_numbers = #tpu.dot_dimension_numbers<[1], [0], [0], [1], [0, 0, 1, 1], [], []>} : vector<4x16xbf16>, vector<16x64xbf16>, vector<4x64xf32> -> vector<4x64xf32>
    %c0_4 = arith.constant 0 : index
    %c0_5 = arith.constant 0 : index
    %4 = vector.load %arg2[%c0_4, %c0_5] : memref<4x16xbf16, #tpu.memory_space<vmem>>, vector<4x16xbf16>
    %c1 = arith.constant 1 : index
    %c0_6 = arith.constant 0 : index
    %c0_7 = arith.constant 0 : index
    %5 = vector.load %arg1[%c1, %c0_6, %c0_7] : memref<2x16x64xbf16, #tpu.memory_space<vmem>>, vector<1x16x64xbf16>
    %6 = vector.shape_cast %5 : vector<1x16x64xbf16> to vector<16x64xbf16>
    %cst_8 = arith.constant dense<0.000000e+00> : vector<4x64xf32>
    %7 = tpu.matmul %4, %6, %cst_8 {dimension_numbers = #tpu.dot_dimension_numbers<[1], [0], [0], [1], [0, 0, 1, 1], [], []>} : vector<4x16xbf16>, vector<16x64xbf16>, vector<4x64xf32> -> vector<4x64xf32>
    %8 = tpu.concatenate %3, %7 in 0 : vector<4x64xf32>, vector<4x64xf32> -> vector<8x64xf32>
    %c0_9 = arith.constant 0 : index
    %c0_10 = arith.constant 0 : index
    %9 = vector.load %arg3[%c0_9, %c0_10] : memref<8x1xf32, #tpu.memory_space<vmem>>, vector<8x1xf32>
    %10 = vector.broadcast %9 : vector<8x1xf32> to vector<8x64xf32>
    %11 = arith.addf %8, %10 : vector<8x64xf32>
    %c0_11 = arith.constant 0 : index
    %c0_12 = arith.constant 0 : index
    %12 = vector.load %arg4[%c0_11, %c0_12] : memref<8x64xf32, #tpu.memory_space<vmem>>, vector<8x64xf32>
    tpu.vector_store %arg4[%c0_11, %c0_12], %11 {strides = array<i32>} : memref<8x64xf32, #tpu.memory_space<vmem>>, vector<8x64xf32>,
    return
  }
  func.func @transform_0(%arg0: i32) -> (i32, i32, i32) {
    %c0_i32 = arith.constant 0 : i32
    %c0_i32_0 = arith.constant 0 : i32
    %c0_i32_1 = arith.constant 0 : i32
    return %c0_i32, %c0_i32_0, %arg0 : i32, i32, i32
  }
  func.func @transform_1(%arg0: i32) -> (i32, i32) {
    %c0_i32 = arith.constant 0 : i32
    %c0_i32_0 = arith.constant 0 : i32
    %c0_i32_1 = arith.constant 0 : i32
    return %c0_i32, %c0_i32_0 : i32, i32
  }
  func.func @transform_2(%arg0: i32) -> (i32, i32) {
    %c0_i32 = arith.constant 0 : i32
    %c0_i32_0 = arith.constant 0 : i32
    %c0_i32_1 = arith.constant 0 : i32
    return %c0_i32, %c0_i32_0 : i32, i32
  }
  func.func @transform_3(%arg0: i32) -> (i32, i32) {
    %c0_i32 = arith.constant 0 : i32
    %c0_i32_0 = arith.constant 0 : i32
    return %c0_i32, %arg0 : i32, i32
  }
}

</mosaic_0001>

<llo_original>
// kernel: tpu_custom_call.1
$region0: #{tpu_custom_call.1}
  #allocation0 [shape = 'u32[]', space=smem, size = 0x4, offset = 0x4, fixed_abs, tag = 'smem constant byte address 0x4 - core index']
  #allocation1 [shape = 'u32[144,128]{1,0:T(1,128)}', space=vmem, size = 0x12000, scoped, tag = 'internal scratch']
  %s0 = inlined_call_operand.hbm [shape: bf16[2,16,64], index: 0, kind: input, shape index: {}]
  %s1 = inlined_call_operand.vmem [shape: bf16[4,16], index: 1, kind: input, shape index: {}]
  %s2 = inlined_call_operand.vmem [shape: f32[8,1], index: 2, kind: input, shape index: {}]
  %s3 = inlined_call_operand.hbm [shape: f32[8,64], index: 3, kind: output, shape index: {}]
  %s4 = sld [smem:[#allocation0]]
  $region26: #{tpu_custom_call.1} parent=0
    _
  %s6 = ssub.s32 1, %s4
  %s7 = scalar_select 0, %s6, %s4
  $region1: #{tpu_custom_call.1} parent=0
    #allocation2 [shape = 'u8[8192]{0}', space=vmem, size = 0x2000, scoped, tag = 'input window, operand 0, single buffered']
    #allocation3 [shape = 's32[1]{0}', space=sflag, size = 0x4, scoped, tag = 'scoped memory for tpu_custom_call.1']
    #allocation4 [shape = 's32[1]{0}', space=sflag, size = 0x4, scoped, tag = 'scoped memory for tpu_custom_call.1']
    #allocation5 [shape = 'u8[4096]{0}', space=vmem, size = 0x1000, scoped, tag = 'output window, operand 0, single buffered']
    %8 = vsyncpa [#allocation3], 0
    %9 = vsyncpa [#allocation4], 0
    // Predicated region
    $region2: #{tpu_custom_call.1} parent=1 // pred_check
      _
    $region3: #{tpu_custom_call.1} parent=1 // pred_check_branch
      %11 = sbr.rel (0) target = $region5
    $region4: #{tpu_custom_call.1} parent=1 // pred_region
      %s13 = ssub.s32 256, 256
      %14 = vsyncadd [#allocation3], %s13
      %s15 = sshll.u32 [#allocation2], 4
      %s16 = int_to_ptr.vmem [resolvable:$true] %s15
      %21 = dma.hbm_to_vmem [thread:$0]  %s0, 256, %s16, [#allocation3], 64, 64, 4
    $region5: #{tpu_custom_call.1} parent=1 // pred_fallthru
      _
    // Predicated region
    $region6: #{tpu_custom_call.1} parent=1 // pred_check
      _
    $region7: #{tpu_custom_call.1} parent=1 // pred_check_branch
      %23 = sbr.rel (0) target = $region9
    $region8: #{tpu_custom_call.1} parent=1 // pred_region
      _
    $region9: #{tpu_custom_call.1} parent=1 // pred_fallthru
      _
    // Predicated region
    $region10: #{tpu_custom_call.1} parent=1 // pred_check
      _
    $region11: #{tpu_custom_call.1} parent=1 // pred_check_branch
      %25 = sbr.rel (0) target = $region13
    $region12: #{tpu_custom_call.1} parent=1 // pred_region
      _
    $region13: #{tpu_custom_call.1} parent=1 // pred_fallthru
      _
    // Predicated region
    $region14: #{tpu_custom_call.1} parent=1 // pred_check
      _
    $region15: #{tpu_custom_call.1} parent=1 // pred_check_branch
      %27 = sbr.rel (0) target = $region17
    $region16: #{tpu_custom_call.1} parent=1 // pred_region
      %28 = dma.done [#allocation3], 256
    $region17: #{tpu_custom_call.1} parent=1 // pred_fallthru
      _
    %v30 = vld [vmem:[%s1] sm:$0x3]
    %v31 = vld [vmem:[#allocation2] sm:$0xf]
    %v32 = vld [vmem:[#allocation2 + $0x4] sm:$0xf]
    %v35 = vunpack.c.l.b16 %v31
    %v36 = vunpack.c.l.b16 %v32
    %v37 = vpack.c.b16 %v36, %v35
    %vm39 = vcmask 130048
    %v41 = vsel %vm39, %v30, 0
    %43 = vmatprep.subr.bf16.mxu0 0
    %44 = vmatpush1.bf16.msra.mxu0 %v37
    %45 = vmatprep.subr.bf16.mxu0 0
    %46 = vmatpush1.bf16.msra.mxu0 0
    %47 = vmatprep.subr.bf16.mxu0 0
    %48 = vmatpush1.bf16.msra.mxu0 0
    %49 = vmatprep.subr.bf16.mxu0 0
    %50 = vmatpush1.bf16.msra.mxu0 0
    %51 = vmatprep.subr.bf16.mxu0 0
    %52 = vmatpush1.bf16.msra.mxu0 0
    %53 = vmatprep.subr.bf16.mxu0 0
    %54 = vmatpush1.bf16.msra.mxu0 0
    %55 = vmatprep.subr.bf16.mxu0 0
    %56 = vmatpush1.bf16.msra.mxu0 0
    %57 = vmatprep.subr.bf16.mxu0 0
    %58 = vmatpush1.bf16.msra.mxu0 0
    %59 = vmatprep.subr.bf16.mxu0 0
    %60 = vmatpush1.bf16.msra.mxu0 0
    %61 = vmatprep.subr.bf16.mxu0 0
    %62 = vmatpush1.bf16.msra.mxu0 0
    %63 = vmatprep.subr.bf16.mxu0 0
    %64 = vmatpush1.bf16.msra.mxu0 0
    %65 = vmatprep.subr.bf16.mxu0 0
    %66 = vmatpush1.bf16.msra.mxu0 0
    %67 = vmatprep.subr.bf16.mxu0 0
    %68 = vmatpush1.bf16.msra.mxu0 0
    %69 = vmatprep.subr.bf16.mxu0 0
    %70 = vmatpush1.bf16.msra.mxu0 0
    %71 = vmatprep.subr.bf16.mxu0 0
    %72 = vmatpush1.bf16.msra.mxu0 0
    %73 = vmatprep.subr.bf16.mxu0 0
    %74 = vmatpush1.bf16.msra.mxu0 0
    %75 = vmatprep.mubr.bf16.mxu0 0
    %76 = vmatmul.mubr.bf16.gmra.mrb[0].mxu0 %v41
    %v77 = vpop.f32.mrb[0].mxu0
    %v78 = vadd.f32 0.0, %v77
    %v79 = vpop.f32.mrb[0].mxu0
    %v80 = vpop.f32.mrb[0].mxu0
    %v81 = vpop.f32.mrb[0].mxu0
    %82 = vdwg.mxu0
    %s83 = scalar_lea.vmem [#allocation2], 8
    %v84 = vld [vmem:[%s83] sm:$0xf]
    %v85 = vld [vmem:[%s83 + $0x4] sm:$0xf]
    %v88 = vunpack.c.l.b16 %v84
    %v89 = vunpack.c.l.b16 %v85
    %v90 = vpack.c.b16 %v89, %v88
    %92 = vmatprep.subr.bf16.mxu0 0
    %93 = vmatpush1.bf16.msra.mxu0 %v90
    %94 = vmatprep.subr.bf16.mxu0 0
    %95 = vmatpush1.bf16.msra.mxu0 0
    %96 = vmatprep.subr.bf16.mxu0 0
    %97 = vmatpush1.bf16.msra.mxu0 0
    %98 = vmatprep.subr.bf16.mxu0 0
    %99 = vmatpush1.bf16.msra.mxu0 0
    %100 = vmatprep.subr.bf16.mxu0 0
    %101 = vmatpush1.bf16.msra.mxu0 0
    %102 = vmatprep.subr.bf16.mxu0 0
    %103 = vmatpush1.bf16.msra.mxu0 0
    %104 = vmatprep.subr.bf16.mxu0 0
    %105 = vmatpush1.bf16.msra.mxu0 0
    %106 = vmatprep.subr.bf16.mxu0 0
    %107 = vmatpush1.bf16.msra.mxu0 0
    %108 = vmatprep.subr.bf16.mxu0 0
    %109 = vmatpush1.bf16.msra.mxu0 0
    %110 = vmatprep.subr.bf16.mxu0 0
    %111 = vmatpush1.bf16.msra.mxu0 0
    %112 = vmatprep.subr.bf16.mxu0 0
    %113 = vmatpush1.bf16.msra.mxu0 0
    %114 = vmatprep.subr.bf16.mxu0 0
    %115 = vmatpush1.bf16.msra.mxu0 0
    %116 = vmatprep.subr.bf16.mxu0 0
    %117 = vmatpush1.bf16.msra.mxu0 0
    %118 = vmatprep.subr.bf16.mxu0 0
    %119 = vmatpush1.bf16.msra.mxu0 0
    %120 = vmatprep.subr.bf16.mxu0 0
    %121 = vmatpush1.bf16.msra.mxu0 0
    %122 = vmatprep.subr.bf16.mxu0 0
    %123 = vmatpush1.bf16.msra.mxu0 0
    %124 = vmatprep.mubr.bf16.mxu0 0
    %125 = vmatmul.mubr.bf16.gmra.mrb[0].mxu0 %v41
    %v126 = vpop.f32.mrb[0].mxu0
    %v127 = vadd.f32 0.0, %v126
    %v128 = vpop.f32.mrb[0].mxu0
    %v129 = vpop.f32.mrb[0].mxu0
    %v130 = vpop.f32.mrb[0].mxu0
    %131 = vdwg.mxu0
    %v133 = vrot.slane %v127, 4
    %vm135 = vcmask 1043456
    %v136 = vsel %vm135, %v78, %v133
    %v137 = vld [vmem:[%s2] sm:$0xff]
    %139 = vset.pattern.permute.xlu0 0
    %140 = vperm.xlu0 %139, %v137
    %v141 = vpop.permute.xlu0 %140
    %v143 = vadd.f32 %v136, %v141
    %vm144 = vcmask 523264
    %145 = vst.msk [vmem:[#allocation5] sm:$0xff] %vm144, %v143
    // Predicated region
    $region18: #{tpu_custom_call.1} parent=1 // pred_check
      _
    $region19: #{tpu_custom_call.1} parent=1 // pred_check_branch
      %147 = sbr.rel (0) target = $region21
    $region20: #{tpu_custom_call.1} parent=1 // pred_region
      %s149 = ssub.s32 128, 128
      %150 = vsyncadd [#allocation4], %s149
      %s152 = sshll.u32 [#allocation5], 4
      %s153 = int_to_ptr.vmem [resolvable:$true] %s152
      %155 = dma.vmem_to_hbm [thread:$0]  %s153, 128, %s3, [#allocation4]
    $region21: #{tpu_custom_call.1} parent=1 // pred_fallthru
      _
    // Predicated region
    $region22: #{tpu_custom_call.1} parent=1 // pred_check
      _
    $region23: #{tpu_custom_call.1} parent=1 // pred_check_branch
      %157 = sbr.rel (0) target = $region25
    $region24: #{tpu_custom_call.1} parent=1 // pred_region
      %158 = dma.done [#allocation4], 128
    $region25: #{tpu_custom_call.1} parent=1 // pred_fallthru
      _
    %159 = vsyncpa [#allocation3], 1
    %160 = vsyncpa [#allocation4], 1

</llo_original>
